<compile_context>
chip_gen: v7x
topology: tpu7x:2x2x1
jax: 0.10.0
libtpu: 0.0.40
codegen_flags: <defaults>
</compile_context>

<pallas_src>
import jax
import jax.numpy as jnp
from jax.experimental import pallas as pl
from jax.experimental.pallas import tpu as pltpu

_LANE = 128
_SUBLANE = 8
_TILE_BYTE_BUDGET = 4 * 1024 * 1024   # 4 MiB per tile (in + out + double-buffer = 16 MiB)
_SPLIT_BYTES = 1 * 1024 * 1024        # arrays >= 1 MiB get >= 2 grid steps (v7x dual-TC)
_MAX_LANE_WIDTH = 2048                # widest lane-dense view we attempt


def _decoder_identity_kernel(x_ref, o_ref):
    # The "forward" of the abstract Decoder: pass X through untouched.
    o_ref[...] = x_ref[...]


def _choose_tile_rows(rows, lanes, itemsize):
    """Pick the row-tile size.

    Constraints:
      * multiple of 8 (sublane rule), unless it equals the full row extent;
      * tile bytes <= _TILE_BYTE_BUDGET (dtype-aware);
      * >= 2 grid steps for mid/large arrays so the 'parallel' grid axis can
        shard across v7x's two TensorCores.
    """
    total_bytes = rows * lanes * itemsize
    budget_rows = _TILE_BYTE_BUDGET // max(1, lanes * itemsize)
    budget_rows = max(_SUBLANE, (budget_rows // _SUBLANE) * _SUBLANE)

    if rows <= budget_rows:
        half = (rows // 2 // _SUBLANE) * _SUBLANE
        if total_bytes >= _SPLIT_BYTES and half >= _SUBLANE:
            return half            # >= 2 steps -> both v7x TCs stay busy
        return rows                # full-extent block: always layout-legal
    return budget_rows


def _identity_copy_2d(x2d):
    """Lane-dense, row-tiled identity copy of a 2D array (input aliased to output)."""
    rows, lanes = x2d.shape
    itemsize = jnp.dtype(x2d.dtype).itemsize
    tile_rows = _choose_tile_rows(rows, lanes, itemsize)
    grid = (pl.cdiv(rows, tile_rows),)

    return pl.pallas_call(
        _decoder_identity_kernel,
        out_shape=jax.ShapeDtypeStruct((rows, lanes), x2d.dtype),
        grid_spec=pl.GridSpec(
            grid=grid,
            in_specs=[pl.BlockSpec((tile_rows, lanes), lambda i: (i, 0))],
            out_specs=pl.BlockSpec((tile_rows, lanes), lambda i: (i, 0)),
        ),
        # Donate the input HBM buffer to the output: no second HBM allocation.
        input_output_aliases={0: 0},
        compiler_params=pltpu.CompilerParams(
            dimension_semantics=("parallel",),
            # 4 double-buffered 4 MiB tiles = 16 MiB; raise the scoped limit so
            # v5e's 16 MiB default never OOMs, well under v7x's 64 MiB physical.
            vmem_limit_bytes=48 * 1024 * 1024,
        ),
    )(x2d)


def _lane_dense_view_shape(total, last_dim):
    """(rows, L): L is the widest multiple of 128 (<= _MAX_LANE_WIDTH) dividing
    `total`; when total isn't 128-divisible, keep the original last dim as the
    lane axis (leading axis gets tiled instead of using one full-extent block)."""
    if total % _LANE == 0:
        width = _MAX_LANE_WIDTH
        while width > _LANE and total % width != 0:
            width //= 2
        return total // width, width
    return total // last_dim, last_dim


def decoder_forward(x, state):
    """Pallas-backed Decoder.forward(X, state) for the abstract base class.

    Returns (output, new_state) the way a concrete seq2seq decoder would;
    here output == X (identity kernel, input buffer aliased to output) and
    new_state == state (carried through unchanged — no kernel launched for it).
    """
    orig_shape = x.shape
    total = x.size
    last = orig_shape[-1] if len(orig_shape) > 0 else 1
    rows, lanes = _lane_dense_view_shape(total, last)
    out2d = _identity_copy_2d(x.reshape(rows, lanes))
    return out2d.reshape(orig_shape), state


def decoder_init_state(enc_outputs, *args):
    # Abstract in the reference module; the natural default is to carry the
    # encoder outputs forward as the initial decoder state.
    return enc_outputs


if __name__ == "__main__":
    key = jax.random.PRNGKey(0)
    kx, ke = jax.random.split(key)

    batch, seq, hidden = 2, 8, 32
    X = jax.random.normal(kx, (batch, seq, hidden), dtype=jnp.float32)
    # Independent reference copy (X's buffer may be donated to the output).
    X_ref = jax.random.normal(kx, (batch, seq, hidden), dtype=jnp.float32)
    enc_outputs = jax.random.normal(ke, (batch, seq, hidden), dtype=jnp.float32)

    state = decoder_init_state(enc_outputs)
    out, new_state = decoder_forward(X, state)
    out = jax.block_until_ready(out)
    new_state = jax.block_until_ready(new_state)

    assert out.shape == X_ref.shape and out.dtype == X_ref.dtype
    assert jnp.allclose(out, X_ref)
    assert jnp.allclose(new_state, enc_outputs)

    print("KERNEL_OK")
</pallas_src>

<mosaic_0001>
module attributes {stable_mosaic.version = 11 : i64} {
  func.func @_decoder_identity_kernel(%arg0: i32, %arg1: memref<1x512xf32, #tpu.memory_space<vmem>>, %arg2: memref<1x512xf32, #tpu.memory_space<vmem>>) attributes {dimension_semantics = [#tpu.dimension_semantics<parallel>], iteration_bounds = array<i64: 1>, scalar_prefetch = 0 : i64, scratch_operands = 0 : i64, tpu.core_type = #tpu.core_type<tc>, window_params = [{transform_indices = @transform_0, window_bounds = array<i64: 1, 512>}, {transform_indices = @transform_1, window_bounds = array<i64: 1, 512>}]} {
    %c0 = arith.constant 0 : index
    %c0_0 = arith.constant 0 : index
    %0 = vector.load %arg1[%c0, %c0_0] : memref<1x512xf32, #tpu.memory_space<vmem>>, vector<1x512xf32>
    %c0_1 = arith.constant 0 : index
    %c0_2 = arith.constant 0 : index
    %1 = vector.load %arg2[%c0_1, %c0_2] : memref<1x512xf32, #tpu.memory_space<vmem>>, vector<1x512xf32>
    tpu.vector_store %arg2[%c0_1, %c0_2], %0 {strides = array<i32>} : memref<1x512xf32, #tpu.memory_space<vmem>>, vector<1x512xf32>,
    return
  }
  func.func @transform_0(%arg0: i32) -> (i32, i32) {
    %c0_i32 = arith.constant 0 : i32
    %c0_i32_0 = arith.constant 0 : i32
    return %arg0, %c0_i32 : i32, i32
  }
  func.func @transform_1(%arg0: i32) -> (i32, i32) {
    %c0_i32 = arith.constant 0 : i32
    %c0_i32_0 = arith.constant 0 : i32
    return %arg0, %c0_i32 : i32, i32
  }
}

</mosaic_0001>

<llo_original>
// kernel: tpu_custom_call.1
$region0: #{tpu_custom_call.1}
  #allocation0 [shape = 'u32[]', space=smem, size = 0x4, offset = 0x4, fixed_abs, tag = 'smem constant byte address 0x4 - core index']
  #allocation1 [shape = 'u32[144,128]{1,0:T(1,128)}', space=vmem, size = 0x12000, scoped, tag = 'internal scratch']
  %s0 = inlined_call_operand.hbm [shape: f32[1,512], index: 0, kind: input, shape index: {}, may-alias: {0,1}]
  %s1 = inlined_call_operand.hbm [shape: f32[1,512], index: 1, kind: output, shape index: {}, may-alias: {0,1}]
  %s2 = sld [smem:[#allocation0]]
  $region18: #{tpu_custom_call.1} parent=0
    _
  %s4 = ssub.s32 1, %s2
  %s5 = scalar_select 0, %s4, %s2
  $region1: #{tpu_custom_call.1} parent=0
    #allocation2 [shape = 'u8[2048]{0}', space=vmem, size = 0x800, scoped, tag = 'input window, operand 0, single buffered']
    #allocation3 [shape = 's32[1]{0}', space=sflag, size = 0x4, scoped, tag = 'scoped memory for tpu_custom_call.1']
    #allocation4 [shape = 's32[1]{0}', space=sflag, size = 0x4, scoped, tag = 'scoped memory for tpu_custom_call.1']
    #allocation5 [shape = 'u8[2048]{0}', space=vmem, size = 0x800, scoped, tag = 'output window, operand 0, single buffered']
    %6 = vsyncpa [#allocation3], 0
    %7 = vsyncpa [#allocation4], 0
    // Predicated region
    $region2: #{tpu_custom_call.1} parent=1 // pred_check
      _
    $region3: #{tpu_custom_call.1} parent=1 // pred_check_branch
      %9 = sbr.rel (0) target = $region5
    $region4: #{tpu_custom_call.1} parent=1 // pred_region
      %s11 = ssub.s32 64, 64
      %12 = vsyncadd [#allocation3], %s11
      %s14 = sshll.u32 [#allocation2], 4
      %s15 = int_to_ptr.vmem [resolvable:$true] %s14
      %17 = dma.hbm_to_vmem [thread:$0]  %s0, 64, %s15, [#allocation3]
    $region5: #{tpu_custom_call.1} parent=1 // pred_fallthru
      _
    // Predicated region
    $region6: #{tpu_custom_call.1} parent=1 // pred_check
      _
    $region7: #{tpu_custom_call.1} parent=1 // pred_check_branch
      %19 = sbr.rel (0) target = $region9
    $region8: #{tpu_custom_call.1} parent=1 // pred_region
      %20 = dma.done [#allocation3], 64
    $region9: #{tpu_custom_call.1} parent=1 // pred_fallthru
      _
    %v21 = vld [vmem:[#allocation2] sm:$0xf]
    %v22 = vlaneseq
    %vm23 = vcmp.ge.s32.totalorder %v22, 0
    %vm24 = vcmp.lt.s32.totalorder %v22, 512
    %vm25 = vmand %vm23, %vm24
    %26 = vst.msk [vmem:[#allocation5] sm:$0xf] %vm25, %v21
    // Predicated region
    $region10: #{tpu_custom_call.1} parent=1 // pred_check
      _
    $region11: #{tpu_custom_call.1} parent=1 // pred_check_branch
      %28 = sbr.rel (0) target = $region13
    $region12: #{tpu_custom_call.1} parent=1 // pred_region
      %s30 = ssub.s32 64, 64
      %31 = vsyncadd [#allocation4], %s30
      %s33 = sshll.u32 [#allocation5], 4
      %s34 = int_to_ptr.vmem [resolvable:$true] %s33
      %36 = dma.vmem_to_hbm [thread:$0]  %s34, 64, %s1, [#allocation4]
    $region13: #{tpu_custom_call.1} parent=1 // pred_fallthru
      _
    // Predicated region
    $region14: #{tpu_custom_call.1} parent=1 // pred_check
      _
    $region15: #{tpu_custom_call.1} parent=1 // pred_check_branch
      %38 = sbr.rel (0) target = $region17
    $region16: #{tpu_custom_call.1} parent=1 // pred_region
      %39 = dma.done [#allocation4], 64
    $region17: #{tpu_custom_call.1} parent=1 // pred_fallthru
      _
    %40 = vsyncpa [#allocation3], 1
    %41 = vsyncpa [#allocation4], 1

</llo_original>
